<compile_context>
chip_gen: v7x
topology: tpu7x:2x2x1
jax: 0.10.0
libtpu: 0.0.40
codegen_flags: <defaults>
</compile_context>

<pallas_src>
import functools

import jax
import jax.numpy as jnp
from jax import lax
from jax.experimental import pallas as pl
from jax.experimental.pallas import tpu as pltpu

LANES = 128
SUBLANES = 8
MAX_BLOCK_ROWS = 1024  # (1024,128) f32 block = 512 KiB; 3 arrays * 2 buffers = 3 MiB VMEM


def _compute_loss(x, t, alpha, gamma):
    """Elementwise sigmoid focal loss in f32 (torchvision semantics)."""
    e = jnp.exp(-jnp.abs(x))                    # single exp, reused below
    inv = 1.0 / (1.0 + e)
    p = jnp.where(x >= 0, inv, e * inv)         # numerically stable sigmoid(x)
    # stable BCE-with-logits: max(x,0) - x*t + log1p(exp(-|x|))
    ce = jnp.maximum(x, 0.0) - x * t + jnp.log1p(e)
    p_t = p * t + (1.0 - p) * (1.0 - t)
    m = 1.0 - p_t
    g = float(gamma)
    if g == 2.0:
        mod = m * m                             # avoid pow = exp+log on the single EUP slot
    elif g == 1.0:
        mod = m
    elif g == 0.0:
        mod = jnp.ones_like(m)
    else:
        mod = jnp.power(m, g)
    loss = ce * mod
    if alpha >= 0:
        loss = (alpha * t + (1.0 - alpha) * (1.0 - t)) * loss
    return loss


def _focal_loss_kernel(x_ref, t_ref, o_ref, *, alpha, gamma):
    x = x_ref[...].astype(jnp.float32)
    t = t_ref[...].astype(jnp.float32)
    o_ref[...] = _compute_loss(x, t, alpha, gamma).astype(o_ref.dtype)


def _focal_partial_sum_kernel(x_ref, t_ref, o_ref, *, alpha, gamma, n_valid,
                              block_rows, need_mask):
    x = x_ref[...].astype(jnp.float32)
    t = t_ref[...].astype(jnp.float32)
    loss = _compute_loss(x, t, alpha, gamma)
    if need_mask:
        # zero out the padded tail so it doesn't contribute to the reduction
        i = pl.program_id(0)
        row = lax.broadcasted_iota(jnp.int32, loss.shape, 0)
        lane = lax.broadcasted_iota(jnp.int32, loss.shape, 1)
        flat = (i * block_rows + row) * LANES + lane
        loss = jnp.where(flat < n_valid, loss, 0.0)
    # reduce (block_rows, 128) -> (8, 128) per-block partial (tiny HBM writeback)
    partial = loss.reshape(block_rows // SUBLANES, SUBLANES, LANES).sum(axis=0)
    o_ref[...] = partial


def focal_loss(inputs: jax.Array,
               targets: jax.Array,
               alpha: float = 0.25,
               gamma: float = 2.0,
               reduction: str = "none") -> jax.Array:
    assert inputs.shape == targets.shape
    orig_shape = inputs.shape
    out_dtype = inputs.dtype if jnp.issubdtype(inputs.dtype, jnp.floating) else jnp.float32

    x = inputs.reshape(-1)
    t = targets.reshape(-1)
    n = x.shape[0]

    rows_needed = pl.cdiv(n, LANES)
    block_rows = min(MAX_BLOCK_ROWS,
                     ((rows_needed + SUBLANES - 1) // SUBLANES) * SUBLANES)
    num_blocks = pl.cdiv(rows_needed, block_rows)
    rows = num_blocks * block_rows
    pad = rows * LANES - n
    if pad:
        x = jnp.pad(x, (0, pad))
        t = jnp.pad(t, (0, pad))
    x2 = x.reshape(rows, LANES)
    t2 = t.reshape(rows, LANES)

    in_specs = [
        pl.BlockSpec((block_rows, LANES), lambda i: (i, 0)),
        pl.BlockSpec((block_rows, LANES), lambda i: (i, 0)),
    ]
    cparams = pltpu.CompilerParams(dimension_semantics=("parallel",))

    if reduction == "none":
        kernel = functools.partial(_focal_loss_kernel, alpha=alpha, gamma=gamma)
        out2 = pl.pallas_call(
            kernel,
            out_shape=jax.ShapeDtypeStruct((rows, LANES), out_dtype),
            grid=(num_blocks,),
            in_specs=in_specs,
            out_specs=pl.BlockSpec((block_rows, LANES), lambda i: (i, 0)),
            compiler_params=cparams,
        )(x2, t2)
        return out2.reshape(-1)[:n].reshape(orig_shape)

    if reduction in ("sum", "mean"):
        kernel = functools.partial(
            _focal_partial_sum_kernel, alpha=alpha, gamma=gamma,
            n_valid=n, block_rows=block_rows, need_mask=pad > 0)
        partials = pl.pallas_call(
            kernel,
            out_shape=jax.ShapeDtypeStruct((num_blocks * SUBLANES, LANES), jnp.float32),
            grid=(num_blocks,),
            in_specs=in_specs,
            out_specs=pl.BlockSpec((SUBLANES, LANES), lambda i: (i, 0)),
            compiler_params=cparams,
        )(x2, t2)
        total = jnp.sum(partials)
        if reduction == "mean":
            total = total / n
        return total.astype(out_dtype)

    raise ValueError(f"unknown reduction: {reduction}")


def _focal_loss_ref(inputs, targets, alpha=0.25, gamma=2.0):
    # pure-JAX reference (matches torchvision.ops.sigmoid_focal_loss, reduction='none')
    x = inputs.astype(jnp.float32)
    t = targets.astype(jnp.float32)
    p = jax.nn.sigmoid(x)
    ce = jnp.maximum(x, 0.0) - x * t + jnp.log1p(jnp.exp(-jnp.abs(x)))
    p_t = p * t + (1.0 - p) * (1.0 - t)
    loss = ce * (1.0 - p_t) ** gamma
    if alpha >= 0:
        loss = (alpha * t + (1.0 - alpha) * (1.0 - t)) * loss
    return loss


if __name__ == "__main__":
    key = jax.random.PRNGKey(0)
    k1, k2, k3, k4 = jax.random.split(key, 4)

    # small NCHW-like shape consistent with a dense-prediction head
    shape = (2, 4, 16, 16)
    inputs = jax.random.normal(k1, shape, dtype=jnp.float32)             # logits
    targets = jax.random.bernoulli(k2, 0.3, shape).astype(jnp.float32)   # binary labels

    ref = _focal_loss_ref(inputs, targets)

    out = focal_loss(inputs, targets, alpha=0.25, gamma=2.0, reduction="none")
    out = jax.block_until_ready(out)
    assert out.shape == shape
    assert jnp.allclose(out, ref, atol=1e-5, rtol=1e-5), "mismatch vs reference (none)"

    out_sum = jax.block_until_ready(focal_loss(inputs, targets, reduction="sum"))
    assert jnp.allclose(out_sum, jnp.sum(ref), atol=1e-3, rtol=1e-5), "mismatch (sum)"

    out_mean = jax.block_until_ready(focal_loss(inputs, targets, reduction="mean"))
    assert jnp.allclose(out_mean, jnp.mean(ref), atol=1e-6, rtol=1e-5), "mismatch (mean)"

    # odd-sized input to exercise padding + in-kernel tail masking on the reduced path
    shape2 = (3, 5, 7)
    inputs2 = jax.random.normal(k3, shape2, dtype=jnp.float32)
    targets2 = jax.random.bernoulli(k4, 0.5, shape2).astype(jnp.float32)
    ref2 = _focal_loss_ref(inputs2, targets2)
    out2 = jax.block_until_ready(focal_loss(inputs2, targets2, reduction="none"))
    assert jnp.allclose(out2, ref2, atol=1e-5, rtol=1e-5), "mismatch (padded none)"
    out2_sum = jax.block_until_ready(focal_loss(inputs2, targets2, reduction="sum"))
    assert jnp.allclose(out2_sum, jnp.sum(ref2), atol=1e-4, rtol=1e-5), "mismatch (padded sum)"

    print("KERNEL_OK")
</pallas_src>

<mosaic_0001>
module attributes {stable_mosaic.version = 11 : i64} {
  func.func @_focal_loss_kernel(%arg0: i32, %arg1: memref<16x128xf32, #tpu.memory_space<vmem>>, %arg2: memref<16x128xf32, #tpu.memory_space<vmem>>, %arg3: memref<16x128xf32, #tpu.memory_space<vmem>>) attributes {dimension_semantics = [#tpu.dimension_semantics<parallel>], iteration_bounds = array<i64: 1>, scalar_prefetch = 0 : i64, scratch_operands = 0 : i64, tpu.core_type = #tpu.core_type<tc>, window_params = [{transform_indices = @transform_0, window_bounds = array<i64: 16, 128>}, {transform_indices = @transform_1, window_bounds = array<i64: 16, 128>}, {transform_indices = @transform_2, window_bounds = array<i64: 16, 128>}]} {
    %c0 = arith.constant 0 : index
    %c0_0 = arith.constant 0 : index
    %0 = vector.load %arg1[%c0, %c0_0] : memref<16x128xf32, #tpu.memory_space<vmem>>, vector<16x128xf32>
    %c0_1 = arith.constant 0 : index
    %c0_2 = arith.constant 0 : index
    %1 = vector.load %arg2[%c0_1, %c0_2] : memref<16x128xf32, #tpu.memory_space<vmem>>, vector<16x128xf32>
    %2 = math.absf %0 : vector<16x128xf32>
    %cst = arith.constant 0.000000e+00 : f32
    %3 = vector.broadcast %cst : f32 to vector<16x128xf32>
    %4 = arith.subf %3, %2 : vector<16x128xf32>
    %5 = math.exp %4 : vector<16x128xf32>
    %cst_3 = arith.constant 1.000000e+00 : f32
    %6 = vector.broadcast %cst_3 : f32 to vector<16x128xf32>
    %7 = arith.addf %6, %5 : vector<16x128xf32>
    %cst_4 = arith.constant 1.000000e+00 : f32
    %8 = vector.broadcast %cst_4 : f32 to vector<16x128xf32>
    %9 = arith.divf %8, %7 : vector<16x128xf32>
    %cst_5 = arith.constant 0.000000e+00 : f32
    %10 = vector.broadcast %cst_5 : f32 to vector<16x128xf32>
    %11 = arith.cmpf oge, %0, %10 : vector<16x128xf32>
    %12 = arith.mulf %5, %9 : vector<16x128xf32>
    %13 = arith.select %11, %9, %12 : vector<16x128xi1>, vector<16x128xf32>
    %cst_6 = arith.constant 0.000000e+00 : f32
    %14 = vector.broadcast %cst_6 : f32 to vector<16x128xf32>
    %15 = arith.maximumf %0, %14 : vector<16x128xf32>
    %16 = arith.mulf %0, %1 : vector<16x128xf32>
    %17 = arith.subf %15, %16 : vector<16x128xf32>
    %18 = math.log1p %5 : vector<16x128xf32>
    %19 = arith.addf %17, %18 : vector<16x128xf32>
    %20 = arith.mulf %13, %1 : vector<16x128xf32>
    %cst_7 = arith.constant 1.000000e+00 : f32
    %21 = vector.broadcast %cst_7 : f32 to vector<16x128xf32>
    %22 = arith.subf %21, %13 : vector<16x128xf32>
    %cst_8 = arith.constant 1.000000e+00 : f32
    %23 = vector.broadcast %cst_8 : f32 to vector<16x128xf32>
    %24 = arith.subf %23, %1 : vector<16x128xf32>
    %25 = arith.mulf %22, %24 : vector<16x128xf32>
    %26 = arith.addf %20, %25 : vector<16x128xf32>
    %cst_9 = arith.constant 1.000000e+00 : f32
    %27 = vector.broadcast %cst_9 : f32 to vector<16x128xf32>
    %28 = arith.subf %27, %26 : vector<16x128xf32>
    %29 = arith.mulf %28, %28 : vector<16x128xf32>
    %30 = arith.mulf %19, %29 : vector<16x128xf32>
    %cst_10 = arith.constant 2.500000e-01 : f32
    %31 = vector.broadcast %cst_10 : f32 to vector<16x128xf32>
    %32 = arith.mulf %31, %1 : vector<16x128xf32>
    %cst_11 = arith.constant 1.000000e+00 : f32
    %33 = vector.broadcast %cst_11 : f32 to vector<16x128xf32>
    %34 = arith.subf %33, %1 : vector<16x128xf32>
    %cst_12 = arith.constant 7.500000e-01 : f32
    %35 = vector.broadcast %cst_12 : f32 to vector<16x128xf32>
    %36 = arith.mulf %35, %34 : vector<16x128xf32>
    %37 = arith.addf %32, %36 : vector<16x128xf32>
    %38 = arith.mulf %37, %30 : vector<16x128xf32>
    %c0_13 = arith.constant 0 : index
    %c0_14 = arith.constant 0 : index
    %39 = vector.load %arg3[%c0_13, %c0_14] : memref<16x128xf32, #tpu.memory_space<vmem>>, vector<16x128xf32>
    tpu.vector_store %arg3[%c0_13, %c0_14], %38 {strides = array<i32>} : memref<16x128xf32, #tpu.memory_space<vmem>>, vector<16x128xf32>,
    return
  }
  func.func @transform_0(%arg0: i32) -> (i32, i32) {
    %c0_i32 = arith.constant 0 : i32
    %c0_i32_0 = arith.constant 0 : i32
    return %arg0, %c0_i32 : i32, i32
  }
  func.func @transform_1(%arg0: i32) -> (i32, i32) {
    %c0_i32 = arith.constant 0 : i32
    %c0_i32_0 = arith.constant 0 : i32
    return %arg0, %c0_i32 : i32, i32
  }
  func.func @transform_2(%arg0: i32) -> (i32, i32) {
    %c0_i32 = arith.constant 0 : i32
    %c0_i32_0 = arith.constant 0 : i32
    return %arg0, %c0_i32 : i32, i32
  }
}

</mosaic_0001>

<llo_original>
// kernel: tpu_custom_call.1
$region0: #{tpu_custom_call.1}
  #allocation0 [shape = 'u32[]', space=smem, size = 0x4, offset = 0x4, fixed_abs, tag = 'smem constant byte address 0x4 - core index']
  #allocation1 [shape = 'u32[144,128]{1,0:T(1,128)}', space=vmem, size = 0x12000, scoped, tag = 'internal scratch']
  %s0 = inlined_call_operand.hbm [shape: f32[16,128], index: 0, kind: input, shape index: {}]
  %s1 = inlined_call_operand.hbm [shape: f32[16,128], index: 1, kind: input, shape index: {}]
  %s2 = inlined_call_operand.hbm [shape: f32[16,128], index: 2, kind: output, shape index: {}]
  %s3 = sld [smem:[#allocation0]]
  $region26: #{tpu_custom_call.1} parent=0
    _
  %s5 = ssub.s32 1, %s3
  %s6 = scalar_select 0, %s5, %s3
  $region1: #{tpu_custom_call.1} parent=0
    #allocation2 [shape = 'u8[8192]{0}', space=vmem, size = 0x2000, scoped, tag = 'input window, operand 0, single buffered']
    #allocation3 [shape = 's32[1]{0}', space=sflag, size = 0x4, scoped, tag = 'scoped memory for tpu_custom_call.1']
    #allocation4 [shape = 's32[1]{0}', space=sflag, size = 0x4, scoped, tag = 'scoped memory for tpu_custom_call.1']
    #allocation5 [shape = 'u8[8192]{0}', space=vmem, size = 0x2000, scoped, tag = 'input window, operand 1, single buffered']
    #allocation6 [shape = 's32[1]{0}', space=sflag, size = 0x4, scoped, tag = 'scoped memory for tpu_custom_call.1']
    #allocation7 [shape = 'u8[8192]{0}', space=vmem, size = 0x2000, scoped, tag = 'output window, operand 0, single buffered']
    %7 = vsyncpa [#allocation3], 0
    %8 = vsyncpa [#allocation6], 0
    %9 = vsyncpa [#allocation4], 0
    // Predicated region
    $region2: #{tpu_custom_call.1} parent=1 // pred_check
      _
    $region3: #{tpu_custom_call.1} parent=1 // pred_check_branch
      %11 = sbr.rel (0) target = $region5
    $region4: #{tpu_custom_call.1} parent=1 // pred_region
      %s13 = ssub.s32 256, 256
      %14 = vsyncadd [#allocation3], %s13
      %s15 = sshll.u32 [#allocation2], 4
      %s16 = int_to_ptr.vmem [resolvable:$true] %s15
      %21 = dma.hbm_to_vmem [thread:$0]  %s0, 256, %s16, [#allocation3], 128, 128, 8
    $region5: #{tpu_custom_call.1} parent=1 // pred_fallthru
      _
    // Predicated region
    $region6: #{tpu_custom_call.1} parent=1 // pred_check
      _
    $region7: #{tpu_custom_call.1} parent=1 // pred_check_branch
      %23 = sbr.rel (0) target = $region9
    $region8: #{tpu_custom_call.1} parent=1 // pred_region
      %s25 = ssub.s32 256, 256
      %26 = vsyncadd [#allocation6], %s25
      %s27 = sshll.u32 [#allocation5], 4
      %s28 = int_to_ptr.vmem [resolvable:$true] %s27
      %33 = dma.hbm_to_vmem [thread:$0]  %s1, 256, %s28, [#allocation6], 128, 128, 8
    $region9: #{tpu_custom_call.1} parent=1 // pred_fallthru
      _
    // Predicated region
    $region10: #{tpu_custom_call.1} parent=1 // pred_check
      _
    $region11: #{tpu_custom_call.1} parent=1 // pred_check_branch
      %35 = sbr.rel (0) target = $region13
    $region12: #{tpu_custom_call.1} parent=1 // pred_region
      %36 = dma.done [#allocation3], 256
    $region13: #{tpu_custom_call.1} parent=1 // pred_fallthru
      _
    // Predicated region
    $region14: #{tpu_custom_call.1} parent=1 // pred_check
      _
    $region15: #{tpu_custom_call.1} parent=1 // pred_check_branch
      %38 = sbr.rel (0) target = $region17
    $region16: #{tpu_custom_call.1} parent=1 // pred_region
      %39 = dma.done [#allocation6], 256
    $region17: #{tpu_custom_call.1} parent=1 // pred_fallthru
      _
    %v40 = vld [vmem:[#allocation2] sm:$0xff]
    %v41 = vld [vmem:[#allocation2 + $0x8] sm:$0xff]
    %v42 = vld [vmem:[#allocation5] sm:$0xff]
    %v43 = vld [vmem:[#allocation5 + $0x8] sm:$0xff]
    %v44 = vand.u32 2147483647, %v40
    %v45 = vand.u32 2147483647, %v41
    %v46 = vsub.f32 0.0, %v44
    %v47 = vsub.f32 0.0, %v45
    %v48 = vmul.f32 %v46, 1.442695
    %v49 = vpow.pop %v48
    %v50 = vmul.f32 %v47, 1.442695
    %v51 = vpow.pop %v50
    %v52 = vadd.f32 %v49, 1.0
    %v53 = vadd.f32 %v51, 1.0
    %v54 = vrcp.pop %v52
    %v55 = vmul.f32 1.0, %v54
    %v56 = vrcp.pop %v53
    %v57 = vmul.f32 1.0, %v56
    %vm58 = vcmp.ge.f32.partialorder %v40, 0.0
    %vm59 = vcmp.ge.f32.partialorder %v41, 0.0
    %v60 = vmul.f32 %v49, %v55
    %v61 = vmul.f32 %v51, %v57
    %v62 = vsel %vm58, %v55, %v60
    %v63 = vsel %vm59, %v57, %v61
    %v64 = vmax.f32 %v40, 0.0
    %v65 = vmax.f32 %v41, 0.0
    %v66 = vmul.f32 %v40, %v42
    %v67 = vmul.f32 %v41, %v43
    %v68 = vsub.f32 %v64, %v66
    %v69 = vsub.f32 %v65, %v67
    %v70 = vadd.f32 %v49, 1.0
    %v71 = vlog2.pop %v70
    %v72 = vmul.f32 %v71, 0.6931472
    %v73 = vmul.f32 -0.5, %v49
    %v74 = vadd.f32 %v73, 1.0
    %v75 = vmul.f32 %v74, %v49
    %v76 = vand.u32 2147483647, %v49
    %vm77 = vcmp.lt.f32.partialorder %v76, 0.0004427343
    %v78 = vsel %vm77, %v75, %v72
    %v79 = vadd.f32 %v51, 1.0
    %v80 = vlog2.pop %v79
    %v81 = vmul.f32 %v80, 0.6931472
    %v82 = vmul.f32 -0.5, %v51
    %v83 = vadd.f32 %v82, 1.0
    %v84 = vmul.f32 %v83, %v51
    %v85 = vand.u32 2147483647, %v51
    %vm86 = vcmp.lt.f32.partialorder %v85, 0.0004427343
    %v87 = vsel %vm86, %v84, %v81
    %v88 = vadd.f32 %v68, %v78
    %v89 = vadd.f32 %v69, %v87
    %v90 = vmul.f32 %v62, %v42
    %v91 = vmul.f32 %v63, %v43
    %v92 = vsub.f32 1.0, %v62
    %v93 = vsub.f32 1.0, %v63
    %v94 = vsub.f32 1.0, %v42
    %v95 = vsub.f32 1.0, %v43
    %v96 = vmul.f32 %v92, %v94
    %v97 = vmul.f32 %v93, %v95
    %v98 = vadd.f32 %v90, %v96
    %v99 = vadd.f32 %v91, %v97
    %v100 = vsub.f32 1.0, %v98
    %v101 = vsub.f32 1.0, %v99
    %v102 = vmul.f32 %v100, %v100
    %v103 = vmul.f32 %v101, %v101
    %v104 = vmul.f32 %v88, %v102
    %v105 = vmul.f32 %v89, %v103
    %v106 = vmul.f32 %v42, 0.25
    %v107 = vmul.f32 %v43, 0.25
    %v108 = vmul.f32 %v94, 0.75
    %v109 = vmul.f32 %v95, 0.75
    %v110 = vadd.f32 %v106, %v108
    %v111 = vadd.f32 %v107, %v109
    %v112 = vmul.f32 %v110, %v104
    %v113 = vmul.f32 %v111, %v105
    %114 = vst [vmem:[#allocation7] sm:$0xff] %v112
    %115 = vst [vmem:[#allocation7 + $0x8] sm:$0xff] %v113
    // Predicated region
    $region18: #{tpu_custom_call.1} parent=1 // pred_check
      _
    $region19: #{tpu_custom_call.1} parent=1 // pred_check_branch
      %117 = sbr.rel (0) target = $region21
    $region20: #{tpu_custom_call.1} parent=1 // pred_region
      %s119 = ssub.s32 256, 256
      %120 = vsyncadd [#allocation4], %s119
      %s121 = sshll.u32 [#allocation7], 4
      %s122 = int_to_ptr.vmem [resolvable:$true] %s121
      %127 = dma.vmem_to_hbm [thread:$0]  %s122, 256, %s2, [#allocation4], 128, 128, 8
    $region21: #{tpu_custom_call.1} parent=1 // pred_fallthru
      _
    // Predicated region
    $region22: #{tpu_custom_call.1} parent=1 // pred_check
      _
    $region23: #{tpu_custom_call.1} parent=1 // pred_check_branch
      %129 = sbr.rel (0) target = $region25
    $region24: #{tpu_custom_call.1} parent=1 // pred_region
      %130 = dma.done [#allocation4], 256
    $region25: #{tpu_custom_call.1} parent=1 // pred_fallthru
      _
    %131 = vsyncpa [#allocation3], 1
    %132 = vsyncpa [#allocation6], 1
    %133 = vsyncpa [#allocation4], 1

</llo_original>
